<compile_context>
chip_gen: v7x
topology: tpu7x:2x2x1
jax: 0.10.0
libtpu: 0.0.40
codegen_flags: <defaults>
</compile_context>

<pallas_src>
import functools
import itertools

import jax
import jax.numpy as jnp
import numpy as np
from jax.experimental import pallas as pl
from jax.experimental.pallas import tpu as pltpu


def _round_up(x, m):
    return ((x + m - 1) // m) * m


# ---------------------------------------------------------------------------
# Pallas kernel: computes one [TN, T_pad] block of the matching cost matrix.
# ---------------------------------------------------------------------------
def _cost_kernel(logits_ref, obox_ref, tfeat_ref, onehot_ref, c_ref, *,
                 alpha, w_class, w_bbox, w_giou):
    # ---- focal class cost on the small [TN, C_pad] logits block ------------
    p = jax.nn.sigmoid(logits_ref[...])                        # [TN, C]
    one_m_p = 1.0 - p
    # gamma == 2.0 -> explicit squares (VPU muls) instead of pow (EUP exp/log).
    pos = alpha * (one_m_p * one_m_p) * (-jnp.log(p + 1e-8))
    neg = (1.0 - alpha) * (p * p) * (-jnp.log(1.0 - p + 1e-8))
    pc = pos - neg                                             # [TN, C]
    # Expand to [TN, T] with a one-hot matmul on the otherwise-idle MXU.
    cost_class = jnp.dot(pc, onehot_ref[...],
                         preferred_element_type=jnp.float32,
                         precision=jax.lax.Precision.HIGHEST)  # [TN, T]

    ob = obox_ref[...]                                         # [TN, 4] cxcywh
    tf = tfeat_ref[...]                                        # [8, T]: cx,cy,w,h,x0,y0,x1,y1

    # ---- L1 box cost (cdist p=1 on cxcywh) ----------------------------------
    cost_bbox = (jnp.abs(ob[:, 0:1] - tf[0:1, :]) +
                 jnp.abs(ob[:, 1:2] - tf[1:2, :]) +
                 jnp.abs(ob[:, 2:3] - tf[2:3, :]) +
                 jnp.abs(ob[:, 3:4] - tf[3:4, :]))             # [TN, T]

    # ---- GIoU cost ----------------------------------------------------------
    ox0 = ob[:, 0:1] - 0.5 * ob[:, 2:3]
    oy0 = ob[:, 1:2] - 0.5 * ob[:, 3:4]
    ox1 = ob[:, 0:1] + 0.5 * ob[:, 2:3]
    oy1 = ob[:, 1:2] + 0.5 * ob[:, 3:4]
    tx0, ty0, tx1, ty1 = tf[4:5, :], tf[5:6, :], tf[6:7, :], tf[7:8, :]

    area_o = (ox1 - ox0) * (oy1 - oy0)                         # [TN, 1]
    area_t = (tx1 - tx0) * (ty1 - ty0)                         # [1, T]

    inter_w = jnp.maximum(jnp.minimum(ox1, tx1) - jnp.maximum(ox0, tx0), 0.0)
    inter_h = jnp.maximum(jnp.minimum(oy1, ty1) - jnp.maximum(oy0, ty0), 0.0)
    inter = inter_w * inter_h                                  # [TN, T]
    union = area_o + area_t - inter
    iou = inter * pl.reciprocal(union, approx=True)

    enc_w = jnp.maximum(jnp.maximum(ox1, tx1) - jnp.minimum(ox0, tx0), 0.0)
    enc_h = jnp.maximum(jnp.maximum(oy1, ty1) - jnp.minimum(oy0, ty0), 0.0)
    enc_area = enc_w * enc_h
    giou = iou - (enc_area - union) * pl.reciprocal(enc_area, approx=True)

    c_ref[...] = w_bbox * cost_bbox + w_class * cost_class + w_giou * (-giou)


def _pick_row_tile(n, t_pad, c_pad, budget_bytes=24 * 1024 * 1024):
    """Largest row tile (multiple of 8) whose blocks fit a conservative VMEM budget.

    Budget is sized so the kernel is safe on v5e/v6e/v7x with a 32 MiB scoped
    VMEM limit (double-buffered in/out blocks + ~5 [TN, T] f32 temporaries).
    """
    n8 = _round_up(max(n, 1), 8)
    candidates = sorted({min(n8, 1024), 1024, 512, 256, 128, 64, 32, 16, 8},
                        reverse=True)
    for tn in candidates:
        if tn > n8:
            continue
        est = 4 * (2 * tn * c_pad          # logits blocks (double-buffered)
                   + 2 * tn * 4            # obox blocks
                   + 2 * 8 * t_pad         # target feature rows
                   + 2 * c_pad * t_pad     # one-hot operand
                   + 7 * tn * t_pad)       # output (x2) + compute temporaries
        if est <= budget_bytes:
            return tn
    return 8


def _compute_cost_matrix_pallas(logits_flat, out_bbox, tgt_ids, tgt_bbox, *,
                                alpha, w_class, w_bbox, w_giou):
    """logits_flat: [N, num_classes]; out_bbox: [N, 4]; tgt_ids: [T]; tgt_bbox: [T, 4]."""
    N, C = logits_flat.shape
    T = int(tgt_bbox.shape[0])
    if T == 0:                                    # no target boxes at all
        return jnp.zeros((N, 0), jnp.float32)

    t_pad = _round_up(T, 128)
    c_pad = _round_up(C, 128)
    tn = _pick_row_tile(N, t_pad, c_pad)
    n_pad = _round_up(N, tn)

    logits_p = jnp.pad(logits_flat.astype(jnp.float32),
                       ((0, n_pad - N), (0, c_pad - C)))
    obox_p = jnp.pad(out_bbox.astype(jnp.float32), ((0, n_pad - N), (0, 0)))

    # Pad target boxes with non-degenerate dummies so padded columns stay finite.
    tb = tgt_bbox.astype(jnp.float32)
    if t_pad > T:
        pad_box = jnp.broadcast_to(jnp.array([[0.5, 0.5, 1.0, 1.0]], jnp.float32),
                                   (t_pad - T, 4))
        tb = jnp.concatenate([tb, pad_box], axis=0)
    cx, cy, w, h = tb[:, 0], tb[:, 1], tb[:, 2], tb[:, 3]
    tfeat = jnp.stack([cx, cy, w, h,
                       cx - 0.5 * w, cy - 0.5 * h,
                       cx + 0.5 * w, cy + 0.5 * h], axis=0)    # [8, t_pad]

    ids = jnp.asarray(tgt_ids, jnp.int32)
    if t_pad > T:
        ids = jnp.concatenate([ids, jnp.full((t_pad - T,), -1, jnp.int32)])
    onehot = (jnp.arange(c_pad, dtype=jnp.int32)[:, None]
              == ids[None, :]).astype(jnp.float32)             # [c_pad, t_pad]

    kernel = functools.partial(_cost_kernel, alpha=alpha, w_class=w_class,
                               w_bbox=w_bbox, w_giou=w_giou)

    c_full = pl.pallas_call(
        kernel,
        out_shape=jax.ShapeDtypeStruct((n_pad, t_pad), jnp.float32),
        grid=(n_pad // tn,),
        in_specs=[
            pl.BlockSpec((tn, c_pad), lambda i: (i, 0)),
            pl.BlockSpec((tn, 4), lambda i: (i, 0)),
            pl.BlockSpec((8, t_pad), lambda i: (0, 0)),
            pl.BlockSpec((c_pad, t_pad), lambda i: (0, 0)),
        ],
        out_specs=pl.BlockSpec((tn, t_pad), lambda i: (i, 0)),
        compiler_params=pltpu.CompilerParams(
            dimension_semantics=("parallel",),
            vmem_limit_bytes=32 * 1024 * 1024),
    )(logits_p, obox_p, tfeat, onehot)

    return c_full[:N, :T]


# ---------------------------------------------------------------------------
# Host-side linear sum assignment (runs on CPU in the reference too).
# TODO(synk): the Hungarian algorithm is a sequential combinatorial solver with
# no clean Pallas equivalent; it stays on host.
# ---------------------------------------------------------------------------
def _linear_sum_assignment(cost):
    try:
        from scipy.optimize import linear_sum_assignment
        return linear_sum_assignment(cost)
    except Exception:
        # Brute-force fallback for the tiny demo shapes.
        n, m = cost.shape
        if m == 0 or n == 0:
            return np.empty((0,), np.int64), np.empty((0,), np.int64)
        transpose = m > n
        c = cost.T if transpose else cost
        n, m = c.shape  # now n >= m
        best_perm, best_val = None, np.inf
        for perm in itertools.permutations(range(n), m):
            val = sum(c[perm[j], j] for j in range(m))
            if val < best_val:
                best_val, best_perm = val, perm
        rows = np.array(best_perm, np.int64)
        cols = np.arange(m, dtype=np.int64)
        if transpose:
            rows, cols = cols, rows
        order = np.argsort(rows)
        return rows[order], cols[order]


# ---------------------------------------------------------------------------
# HungarianMatcher forward (JAX glue + Pallas hot path).
# ---------------------------------------------------------------------------
class HungarianMatcherPallas:
    def __init__(self, cost_class=1.0, cost_bbox=1.0, cost_giou=1.0,
                 focal_alpha=0.25, Topk=20):
        assert cost_class != 0 or cost_bbox != 0 or cost_giou != 0
        self.cost_class = float(cost_class)
        self.cost_bbox = float(cost_bbox)
        self.cost_giou = float(cost_giou)
        self.focal_alpha = float(focal_alpha)
        self.Topk = int(Topk)

    def __call__(self, outputs, targets):
        pred_logits = outputs["pred_logits"]  # [bs, nq, num_classes]
        pred_boxes = outputs["pred_boxes"]    # [bs, nq, 4]
        bs, nq, num_classes = pred_logits.shape

        # tgt_ids[j] = (target list index) % Topk, repeated per box.
        tgt_ids = []
        for i, v in enumerate(targets):
            tgt_ids.extend([i % self.Topk] * int(v["boxes"].shape[0]))
        tgt_ids = np.asarray(tgt_ids, np.int32)
        total_boxes = int(tgt_ids.shape[0])

        logits_flat = pred_logits.reshape(bs * nq, num_classes).astype(jnp.float32)
        out_bbox = pred_boxes.reshape(bs * nq, 4).astype(jnp.float32)

        if total_boxes > 0:
            tgt_bbox = jnp.concatenate([jnp.asarray(v["boxes"], jnp.float32)
                                        for v in targets], axis=0)      # [T, 4]
            C = _compute_cost_matrix_pallas(
                logits_flat, out_bbox, tgt_ids, tgt_bbox,
                alpha=self.focal_alpha,
                w_class=self.cost_class, w_bbox=self.cost_bbox,
                w_giou=self.cost_giou)
        else:
            C = jnp.zeros((bs * nq, 0), jnp.float32)
        C = C.reshape(bs, nq, -1)

        sizes_temp = [int(t["boxes"].shape[0]) for t in targets]
        sizes = []
        for i in range(len(targets) // self.Topk):
            sizes.append(sum(sizes_temp[self.Topk * i:self.Topk * (i + 1)]))

        C_np = np.asarray(jax.device_get(C))
        indices = []
        off = 0
        for i, sz in enumerate(sizes):
            c_i = C_np[i, :, off:off + sz]
            off += sz
            indices.append(_linear_sum_assignment(c_i))
        return [(np.asarray(r, np.int64), np.asarray(c, np.int64)) for r, c in indices], C


# ---------------------------------------------------------------------------
# Pure-numpy reference of the cost matrix (for correctness check).
# ---------------------------------------------------------------------------
def _reference_cost(pred_logits, pred_boxes, tgt_ids, tgt_bbox,
                    alpha, w_class, w_bbox, w_giou):
    bs, nq, nc = pred_logits.shape
    p = 1.0 / (1.0 + np.exp(-pred_logits.reshape(bs * nq, nc)))
    ob = pred_boxes.reshape(bs * nq, 4)
    gamma = 2.0
    neg = (1 - alpha) * p ** gamma * -np.log(1 - p + 1e-8)
    pos = alpha * (1 - p) ** gamma * -np.log(p + 1e-8)
    cc = pos[:, tgt_ids] - neg[:, tgt_ids]
    cb = np.abs(ob[:, None, :] - tgt_bbox[None, :, :]).sum(-1)

    def to_xyxy(b):
        return np.stack([b[:, 0] - 0.5 * b[:, 2], b[:, 1] - 0.5 * b[:, 3],
                         b[:, 0] + 0.5 * b[:, 2], b[:, 1] + 0.5 * b[:, 3]], -1)

    a, b = to_xyxy(ob), to_xyxy(tgt_bbox)
    area1 = (a[:, 2] - a[:, 0]) * (a[:, 3] - a[:, 1])
    area2 = (b[:, 2] - b[:, 0]) * (b[:, 3] - b[:, 1])
    lt = np.maximum(a[:, None, :2], b[None, :, :2])
    rb = np.minimum(a[:, None, 2:], b[None, :, 2:])
    wh = np.clip(rb - lt, 0, None)
    inter = wh[..., 0] * wh[..., 1]
    union = area1[:, None] + area2[None, :] - inter
    iou = inter / union
    lt2 = np.minimum(a[:, None, :2], b[None, :, :2])
    rb2 = np.maximum(a[:, None, 2:], b[None, :, 2:])
    wh2 = np.clip(rb2 - lt2, 0, None)
    enc = wh2[..., 0] * wh2[..., 1]
    giou = iou - (enc - union) / enc
    C = w_bbox * cb + w_class * cc + w_giou * (-giou)
    return C.reshape(bs, nq, -1)


if __name__ == "__main__":
    key = jax.random.PRNGKey(0)
    bs, num_queries, num_classes, Topk = 2, 8, 8, 4

    k1, k2, k3 = jax.random.split(key, 3)
    pred_logits = jax.random.normal(k1, (bs, num_queries, num_classes), jnp.float32)
    pred_boxes = jnp.concatenate(
        [0.25 + 0.5 * jax.random.uniform(k2, (bs, num_queries, 2)),
         0.1 + 0.2 * jax.random.uniform(k3, (bs, num_queries, 2))], axis=-1)

    # targets: list of length bs * Topk (as implied by sizes/split logic).
    counts = [1, 2, 1, 1, 2, 1, 1, 1]
    targets = []
    tkey = jax.random.PRNGKey(42)
    for i, n in enumerate(counts):
        tkey, ka, kb = jax.random.split(tkey, 3)
        boxes = jnp.concatenate(
            [0.25 + 0.5 * jax.random.uniform(ka, (n, 2)),
             0.1 + 0.2 * jax.random.uniform(kb, (n, 2))], axis=-1)
        targets.append({"boxes": boxes,
                        "labels": jnp.full((n,), i % Topk, jnp.int32)})

    matcher = HungarianMatcherPallas(cost_class=1.0, cost_bbox=1.0, cost_giou=1.0,
                                     focal_alpha=0.25, Topk=Topk)
    outputs = {"pred_logits": pred_logits, "pred_boxes": pred_boxes}
    indices, C = matcher(outputs, targets)
    jax.block_until_ready(C)

    # Silent correctness check of the Pallas-computed cost matrix.
    tgt_ids = np.concatenate([[i % Topk] * c for i, c in enumerate(counts)]).astype(np.int32)
    tgt_bbox_np = np.concatenate([np.asarray(t["boxes"]) for t in targets], 0)
    C_ref = _reference_cost(np.asarray(pred_logits), np.asarray(pred_boxes),
                            tgt_ids, tgt_bbox_np, 0.25, 1.0, 1.0, 1.0)
    # Slightly looser tolerance: approx reciprocals (EUP vrcp) in the kernel.
    assert np.allclose(np.asarray(C), C_ref, rtol=5e-3, atol=5e-3), "cost matrix mismatch"
    assert len(indices) == bs
    for r, c in indices:
        assert r.shape == c.shape

    print("KERNEL_OK")
</pallas_src>

<mosaic_0001>
module attributes {stable_mosaic.version = 11 : i64} {
  func.func @_cost_kernel(%arg0: i32, %arg1: memref<16x128xf32, #tpu.memory_space<vmem>>, %arg2: memref<16x4xf32, #tpu.memory_space<vmem>>, %arg3: memref<8x128xf32, #tpu.memory_space<vmem>>, %arg4: memref<128x128xf32, #tpu.memory_space<vmem>>, %arg5: memref<16x128xf32, #tpu.memory_space<vmem>>) attributes {dimension_semantics = [#tpu.dimension_semantics<parallel>], iteration_bounds = array<i64: 1>, scalar_prefetch = 0 : i64, scratch_operands = 0 : i64, tpu.core_type = #tpu.core_type<tc>, window_params = [{transform_indices = @transform_0, window_bounds = array<i64: 16, 128>}, {transform_indices = @transform_1, window_bounds = array<i64: 16, 4>}, {pipeline_mode = #tpu.pipeline_mode<synchronous>, transform_indices = @transform_2, window_bounds = array<i64: 8, 128>}, {pipeline_mode = #tpu.pipeline_mode<synchronous>, transform_indices = @transform_3, window_bounds = array<i64: 128, 128>}, {transform_indices = @transform_4, window_bounds = array<i64: 16, 128>}]} {
    %c0 = arith.constant 0 : index
    %c0_0 = arith.constant 0 : index
    %0 = vector.load %arg1[%c0, %c0_0] : memref<16x128xf32, #tpu.memory_space<vmem>>, vector<16x128xf32>
    %1 = arith.negf %0 : vector<16x128xf32>
    %2 = math.exp %1 : vector<16x128xf32>
    %cst = arith.constant 1.000000e+00 : f32
    %3 = vector.broadcast %cst : f32 to vector<16x128xf32>
    %4 = arith.addf %3, %2 : vector<16x128xf32>
    %5 = arith.divf %3, %4 : vector<16x128xf32>
    %cst_1 = arith.constant 1.000000e+00 : f32
    %6 = vector.broadcast %cst_1 : f32 to vector<16x128xf32>
    %7 = arith.subf %6, %5 : vector<16x128xf32>
    %8 = arith.mulf %7, %7 : vector<16x128xf32>
    %cst_2 = arith.constant 2.500000e-01 : f32
    %9 = vector.broadcast %cst_2 : f32 to vector<16x128xf32>
    %10 = arith.mulf %9, %8 : vector<16x128xf32>
    %cst_3 = arith.constant 9.99999993E-9 : f32
    %11 = vector.broadcast %cst_3 : f32 to vector<16x128xf32>
    %12 = arith.addf %5, %11 : vector<16x128xf32>
    %13 = math.log %12 : vector<16x128xf32>
    %cst_4 = arith.constant 0.000000e+00 : f32
    %14 = vector.broadcast %cst_4 : f32 to vector<16x128xf32>
    %15 = arith.subf %14, %13 : vector<16x128xf32>
    %16 = arith.mulf %10, %15 : vector<16x128xf32>
    %17 = arith.mulf %5, %5 : vector<16x128xf32>
    %cst_5 = arith.constant 7.500000e-01 : f32
    %18 = vector.broadcast %cst_5 : f32 to vector<16x128xf32>
    %19 = arith.mulf %18, %17 : vector<16x128xf32>
    %cst_6 = arith.constant 1.000000e+00 : f32
    %20 = vector.broadcast %cst_6 : f32 to vector<16x128xf32>
    %21 = arith.subf %20, %5 : vector<16x128xf32>
    %cst_7 = arith.constant 9.99999993E-9 : f32
    %22 = vector.broadcast %cst_7 : f32 to vector<16x128xf32>
    %23 = arith.addf %21, %22 : vector<16x128xf32>
    %24 = math.log %23 : vector<16x128xf32>
    %cst_8 = arith.constant 0.000000e+00 : f32
    %25 = vector.broadcast %cst_8 : f32 to vector<16x128xf32>
    %26 = arith.subf %25, %24 : vector<16x128xf32>
    %27 = arith.mulf %19, %26 : vector<16x128xf32>
    %28 = arith.subf %16, %27 : vector<16x128xf32>
    %c0_9 = arith.constant 0 : index
    %c0_10 = arith.constant 0 : index
    %29 = vector.load %arg4[%c0_9, %c0_10] : memref<128x128xf32, #tpu.memory_space<vmem>>, vector<128x128xf32>
    %cst_11 = arith.constant dense<0.000000e+00> : vector<16x128xf32>
    %30 = tpu.matmul %28, %29, %cst_11 {dimension_numbers = #tpu.dot_dimension_numbers<[1], [0], [0], [1], [0, 0, 1, 1], [], []>, precision = #tpu.contract_precision<fp32>} : vector<16x128xf32>, vector<128x128xf32>, vector<16x128xf32> -> vector<16x128xf32>
    %c0_12 = arith.constant 0 : index
    %c0_13 = arith.constant 0 : index
    %31 = vector.load %arg2[%c0_12, %c0_13] : memref<16x4xf32, #tpu.memory_space<vmem>>, vector<16x4xf32>
    %c0_14 = arith.constant 0 : index
    %c0_15 = arith.constant 0 : index
    %32 = vector.load %arg3[%c0_14, %c0_15] : memref<8x128xf32, #tpu.memory_space<vmem>>, vector<8x128xf32>
    %33 = vector.extract_strided_slice %31 {offsets = [0, 0], sizes = [16, 1], strides = [1, 1]} : vector<16x4xf32> to vector<16x1xf32>
    %34 = vector.extract_strided_slice %32 {offsets = [0, 0], sizes = [1, 128], strides = [1, 1]} : vector<8x128xf32> to vector<1x128xf32>
    %35 = vector.broadcast %33 : vector<16x1xf32> to vector<16x128xf32>
    %36 = vector.broadcast %34 : vector<1x128xf32> to vector<16x128xf32>
    %37 = arith.subf %35, %36 : vector<16x128xf32>
    %38 = math.absf %37 : vector<16x128xf32>
    %39 = vector.extract_strided_slice %31 {offsets = [0, 1], sizes = [16, 1], strides = [1, 1]} : vector<16x4xf32> to vector<16x1xf32>
    %40 = vector.extract_strided_slice %32 {offsets = [1, 0], sizes = [1, 128], strides = [1, 1]} : vector<8x128xf32> to vector<1x128xf32>
    %41 = vector.broadcast %39 : vector<16x1xf32> to vector<16x128xf32>
    %42 = vector.broadcast %40 : vector<1x128xf32> to vector<16x128xf32>
    %43 = arith.subf %41, %42 : vector<16x128xf32>
    %44 = math.absf %43 : vector<16x128xf32>
    %45 = arith.addf %38, %44 : vector<16x128xf32>
    %46 = vector.extract_strided_slice %31 {offsets = [0, 2], sizes = [16, 1], strides = [1, 1]} : vector<16x4xf32> to vector<16x1xf32>
    %47 = vector.extract_strided_slice %32 {offsets = [2, 0], sizes = [1, 128], strides = [1, 1]} : vector<8x128xf32> to vector<1x128xf32>
    %48 = vector.broadcast %46 : vector<16x1xf32> to vector<16x128xf32>
    %49 = vector.broadcast %47 : vector<1x128xf32> to vector<16x128xf32>
    %50 = arith.subf %48, %49 : vector<16x128xf32>
    %51 = math.absf %50 : vector<16x128xf32>
    %52 = arith.addf %45, %51 : vector<16x128xf32>
    %53 = vector.extract_strided_slice %31 {offsets = [0, 3], sizes = [16, 1], strides = [1, 1]} : vector<16x4xf32> to vector<16x1xf32>
    %54 = vector.extract_strided_slice %32 {offsets = [3, 0], sizes = [1, 128], strides = [1, 1]} : vector<8x128xf32> to vector<1x128xf32>
    %55 = vector.broadcast %53 : vector<16x1xf32> to vector<16x128xf32>
    %56 = vector.broadcast %54 : vector<1x128xf32> to vector<16x128xf32>
    %57 = arith.subf %55, %56 : vector<16x128xf32>
    %58 = math.absf %57 : vector<16x128xf32>
    %59 = arith.addf %52, %58 : vector<16x128xf32>
    %60 = vector.extract_strided_slice %31 {offsets = [0, 0], sizes = [16, 1], strides = [1, 1]} : vector<16x4xf32> to vector<16x1xf32>
    %61 = vector.extract_strided_slice %31 {offsets = [0, 2], sizes = [16, 1], strides = [1, 1]} : vector<16x4xf32> to vector<16x1xf32>
    %cst_16 = arith.constant 5.000000e-01 : f32
    %62 = vector.broadcast %cst_16 : f32 to vector<16x1xf32>
    %63 = arith.mulf %62, %61 : vector<16x1xf32>
    %64 = arith.subf %60, %63 : vector<16x1xf32>
    %65 = vector.extract_strided_slice %31 {offsets = [0, 1], sizes = [16, 1], strides = [1, 1]} : vector<16x4xf32> to vector<16x1xf32>
    %66 = vector.extract_strided_slice %31 {offsets = [0, 3], sizes = [16, 1], strides = [1, 1]} : vector<16x4xf32> to vector<16x1xf32>
    %cst_17 = arith.constant 5.000000e-01 : f32
    %67 = vector.broadcast %cst_17 : f32 to vector<16x1xf32>
    %68 = arith.mulf %67, %66 : vector<16x1xf32>
    %69 = arith.subf %65, %68 : vector<16x1xf32>
    %70 = vector.extract_strided_slice %31 {offsets = [0, 0], sizes = [16, 1], strides = [1, 1]} : vector<16x4xf32> to vector<16x1xf32>
    %71 = vector.extract_strided_slice %31 {offsets = [0, 2], sizes = [16, 1], strides = [1, 1]} : vector<16x4xf32> to vector<16x1xf32>
    %cst_18 = arith.constant 5.000000e-01 : f32
    %72 = vector.broadcast %cst_18 : f32 to vector<16x1xf32>
    %73 = arith.mulf %72, %71 : vector<16x1xf32>
    %74 = arith.addf %70, %73 : vector<16x1xf32>
    %75 = vector.extract_strided_slice %31 {offsets = [0, 1], sizes = [16, 1], strides = [1, 1]} : vector<16x4xf32> to vector<16x1xf32>
    %76 = vector.extract_strided_slice %31 {offsets = [0, 3], sizes = [16, 1], strides = [1, 1]} : vector<16x4xf32> to vector<16x1xf32>
    %cst_19 = arith.constant 5.000000e-01 : f32
    %77 = vector.broadcast %cst_19 : f32 to vector<16x1xf32>
    %78 = arith.mulf %77, %76 : vector<16x1xf32>
    %79 = arith.addf %75, %78 : vector<16x1xf32>
    %80 = vector.extract_strided_slice %32 {offsets = [4, 0], sizes = [1, 128], strides = [1, 1]} : vector<8x128xf32> to vector<1x128xf32>
    %81 = vector.extract_strided_slice %32 {offsets = [5, 0], sizes = [1, 128], strides = [1, 1]} : vector<8x128xf32> to vector<1x128xf32>
    %82 = vector.extract_strided_slice %32 {offsets = [6, 0], sizes = [1, 128], strides = [1, 1]} : vector<8x128xf32> to vector<1x128xf32>
    %83 = vector.extract_strided_slice %32 {offsets = [7, 0], sizes = [1, 128], strides = [1, 1]} : vector<8x128xf32> to vector<1x128xf32>
    %84 = arith.subf %74, %64 : vector<16x1xf32>
    %85 = arith.subf %79, %69 : vector<16x1xf32>
    %86 = arith.mulf %84, %85 : vector<16x1xf32>
    %87 = arith.subf %82, %80 : vector<1x128xf32>
    %88 = arith.subf %83, %81 : vector<1x128xf32>
    %89 = arith.mulf %87, %88 : vector<1x128xf32>
    %90 = vector.broadcast %74 : vector<16x1xf32> to vector<16x128xf32>
    %91 = vector.broadcast %82 : vector<1x128xf32> to vector<16x128xf32>
    %92 = arith.minimumf %90, %91 : vector<16x128xf32>
    %93 = vector.broadcast %64 : vector<16x1xf32> to vector<16x128xf32>
    %94 = vector.broadcast %80 : vector<1x128xf32> to vector<16x128xf32>
    %95 = arith.maximumf %93, %94 : vector<16x128xf32>
    %96 = arith.subf %92, %95 : vector<16x128xf32>
    %cst_20 = arith.constant 0.000000e+00 : f32
    %97 = vector.broadcast %cst_20 : f32 to vector<16x128xf32>
    %98 = arith.maximumf %96, %97 : vector<16x128xf32>
    %99 = vector.broadcast %79 : vector<16x1xf32> to vector<16x128xf32>
    %100 = vector.broadcast %83 : vector<1x128xf32> to vector<16x128xf32>
    %101 = arith.minimumf %99, %100 : vector<16x128xf32>
    %102 = vector.broadcast %69 : vector<16x1xf32> to vector<16x128xf32>
    %103 = vector.broadcast %81 : vector<1x128xf32> to vector<16x128xf32>
    %104 = arith.maximumf %102, %103 : vector<16x128xf32>
    %105 = arith.subf %101, %104 : vector<16x128xf32>
    %cst_21 = arith.constant 0.000000e+00 : f32
    %106 = vector.broadcast %cst_21 : f32 to vector<16x128xf32>
    %107 = arith.maximumf %105, %106 : vector<16x128xf32>
    %108 = arith.mulf %98, %107 : vector<16x128xf32>
    %109 = vector.broadcast %86 : vector<16x1xf32> to vector<16x128xf32>
    %110 = vector.broadcast %89 : vector<1x128xf32> to vector<16x128xf32>
    %111 = arith.addf %109, %110 : vector<16x128xf32>
    %112 = arith.subf %111, %108 : vector<16x128xf32>
    %113 = tpu.reciprocal %112 {approx = true} : vector<16x128xf32> -> vector<16x128xf32>
    %114 = arith.mulf %108, %113 : vector<16x128xf32>
    %115 = vector.broadcast %74 : vector<16x1xf32> to vector<16x128xf32>
    %116 = vector.broadcast %82 : vector<1x128xf32> to vector<16x128xf32>
    %117 = arith.maximumf %115, %116 : vector<16x128xf32>
    %118 = vector.broadcast %64 : vector<16x1xf32> to vector<16x128xf32>
    %119 = vector.broadcast %80 : vector<1x128xf32> to vector<16x128xf32>
    %120 = arith.minimumf %118, %119 : vector<16x128xf32>
    %121 = arith.subf %117, %120 : vector<16x128xf32>
    %cst_22 = arith.constant 0.000000e+00 : f32
    %122 = vector.broadcast %cst_22 : f32 to vector<16x128xf32>
    %123 = arith.maximumf %121, %122 : vector<16x128xf32>
    %124 = vector.broadcast %79 : vector<16x1xf32> to vector<16x128xf32>
    %125 = vector.broadcast %83 : vector<1x128xf32> to vector<16x128xf32>
    %126 = arith.maximumf %124, %125 : vector<16x128xf32>
    %127 = vector.broadcast %69 : vector<16x1xf32> to vector<16x128xf32>
    %128 = vector.broadcast %81 : vector<1x128xf32> to vector<16x128xf32>
    %129 = arith.minimumf %127, %128 : vector<16x128xf32>
    %130 = arith.subf %126, %129 : vector<16x128xf32>
    %cst_23 = arith.constant 0.000000e+00 : f32
    %131 = vector.broadcast %cst_23 : f32 to vector<16x128xf32>
    %132 = arith.maximumf %130, %131 : vector<16x128xf32>
    %133 = arith.mulf %123, %132 : vector<16x128xf32>
    %134 = arith.subf %133, %112 : vector<16x128xf32>
    %135 = tpu.reciprocal %133 {approx = true} : vector<16x128xf32> -> vector<16x128xf32>
    %136 = arith.mulf %134, %135 : vector<16x128xf32>
    %137 = arith.subf %114, %136 : vector<16x128xf32>
    %cst_24 = arith.constant 1.000000e+00 : f32
    %138 = vector.broadcast %cst_24 : f32 to vector<16x128xf32>
    %139 = arith.mulf %138, %59 : vector<16x128xf32>
    %cst_25 = arith.constant 1.000000e+00 : f32
    %140 = vector.broadcast %cst_25 : f32 to vector<16x128xf32>
    %141 = arith.mulf %140, %30 : vector<16x128xf32>
    %142 = arith.addf %139, %141 : vector<16x128xf32>
    %cst_26 = arith.constant 0.000000e+00 : f32
    %143 = vector.broadcast %cst_26 : f32 to vector<16x128xf32>
    %144 = arith.subf %143, %137 : vector<16x128xf32>
    %cst_27 = arith.constant 1.000000e+00 : f32
    %145 = vector.broadcast %cst_27 : f32 to vector<16x128xf32>
    %146 = arith.mulf %145, %144 : vector<16x128xf32>
    %147 = arith.addf %142, %146 : vector<16x128xf32>
    %c0_28 = arith.constant 0 : index
    %c0_29 = arith.constant 0 : index
    %148 = vector.load %arg5[%c0_28, %c0_29] : memref<16x128xf32, #tpu.memory_space<vmem>>, vector<16x128xf32>
    tpu.vector_store %arg5[%c0_28, %c0_29], %147 {strides = array<i32>} : memref<16x128xf32, #tpu.memory_space<vmem>>, vector<16x128xf32>,
    return
  }
  func.func @transform_0(%arg0: i32) -> (i32, i32) {
    %c0_i32 = arith.constant 0 : i32
    %c0_i32_0 = arith.constant 0 : i32
    return %arg0, %c0_i32 : i32, i32
  }
  func.func @transform_1(%arg0: i32) -> (i32, i32) {
    %c0_i32 = arith.constant 0 : i32
    %c0_i32_0 = arith.constant 0 : i32
    return %arg0, %c0_i32 : i32, i32
  }
  func.func @transform_2(%arg0: i32) -> (i32, i32) {
    %c0_i32 = arith.constant 0 : i32
    %c0_i32_0 = arith.constant 0 : i32
    %c0_i32_1 = arith.constant 0 : i32
    return %c0_i32, %c0_i32_0 : i32, i32
  }
  func.func @transform_3(%arg0: i32) -> (i32, i32) {
    %c0_i32 = arith.constant 0 : i32
    %c0_i32_0 = arith.constant 0 : i32
    %c0_i32_1 = arith.constant 0 : i32
    return %c0_i32, %c0_i32_0 : i32, i32
  }
  func.func @transform_4(%arg0: i32) -> (i32, i32) {
    %c0_i32 = arith.constant 0 : i32
    %c0_i32_0 = arith.constant 0 : i32
    return %arg0, %c0_i32 : i32, i32
  }
}

</mosaic_0001>

<llo_original>
// kernel: tpu_custom_call.1
$region0: #{tpu_custom_call.1}
  #allocation0 [shape = 'u32[]', space=smem, size = 0x4, offset = 0x4, fixed_abs, tag = 'smem constant byte address 0x4 - core index']
  #allocation1 [shape = 'u32[144,128]{1,0:T(1,128)}', space=vmem, size = 0x12000, scoped, tag = 'internal scratch']
  %s0 = inlined_call_operand.vmem [shape: f32[16,128], index: 0, kind: input, shape index: {}]
  %s1 = inlined_call_operand.vmem [shape: f32[16,4], index: 1, kind: input, shape index: {}]
  %s2 = inlined_call_operand.vmem [shape: f32[8,128], index: 2, kind: input, shape index: {}]
  %s3 = inlined_call_operand.hbm [shape: f32[128,128], index: 3, kind: input, shape index: {}]
  %s4 = inlined_call_operand.hbm [shape: f32[16,128], index: 4, kind: output, shape index: {}]
  %s5 = sld [smem:[#allocation0]]
  $region30: #{tpu_custom_call.1} parent=0
    _
  %s7 = ssub.s32 1, %s5
  %s8 = scalar_select 0, %s7, %s5
  $region1: #{tpu_custom_call.1} parent=0
    #allocation2 [shape = 'u8[65536]{0}', space=vmem, size = 0x10000, scoped, tag = 'input window, operand 3, single buffered']
    #allocation3 [shape = 's32[1]{0}', space=sflag, size = 0x4, scoped, tag = 'scoped memory for tpu_custom_call.1']
    #allocation4 [shape = 's32[1]{0}', space=sflag, size = 0x4, scoped, tag = 'scoped memory for tpu_custom_call.1']
    #allocation5 [shape = 'u8[8192]{0}', space=vmem, size = 0x2000, scoped, tag = 'output window, operand 0, single buffered']
    %9 = vsyncpa [#allocation3], 0
    %10 = vsyncpa [#allocation4], 0
    // Predicated region
    $region2: #{tpu_custom_call.1} parent=1 // pred_check
      _
    $region3: #{tpu_custom_call.1} parent=1 // pred_check_branch
      %12 = sbr.rel (0) target = $region5
    $region4: #{tpu_custom_call.1} parent=1 // pred_region
      _
    $region5: #{tpu_custom_call.1} parent=1 // pred_fallthru
      _
    // Predicated region
    $region6: #{tpu_custom_call.1} parent=1 // pred_check
      _
    $region7: #{tpu_custom_call.1} parent=1 // pred_check_branch
      %14 = sbr.rel (0) target = $region9
    $region8: #{tpu_custom_call.1} parent=1 // pred_region
      _
    $region9: #{tpu_custom_call.1} parent=1 // pred_fallthru
      _
    // Predicated region
    $region10: #{tpu_custom_call.1} parent=1 // pred_check
      _
    $region11: #{tpu_custom_call.1} parent=1 // pred_check_branch
      %16 = sbr.rel (0) target = $region13
    $region12: #{tpu_custom_call.1} parent=1 // pred_region
      _
    $region13: #{tpu_custom_call.1} parent=1 // pred_fallthru
      _
    // Predicated region
    $region14: #{tpu_custom_call.1} parent=1 // pred_check
      _
    $region15: #{tpu_custom_call.1} parent=1 // pred_check_branch
      %18 = sbr.rel (0) target = $region17
    $region16: #{tpu_custom_call.1} parent=1 // pred_region
      %s20 = ssub.s32 2048, 2048
      %21 = vsyncadd [#allocation3], %s20
      %s22 = sshll.u32 [#allocation2], 4
      %s23 = int_to_ptr.vmem [resolvable:$true] %s22
      %28 = dma.hbm_to_vmem [thread:$0]  %s3, 2048, %s23, [#allocation3], 128, 128, 8
    $region17: #{tpu_custom_call.1} parent=1 // pred_fallthru
      _
    // Predicated region
    $region18: #{tpu_custom_call.1} parent=1 // pred_check
      _
    $region19: #{tpu_custom_call.1} parent=1 // pred_check_branch
      %30 = sbr.rel (0) target = $region21
    $region20: #{tpu_custom_call.1} parent=1 // pred_region
      %31 = dma.done [#allocation3], 2048
    $region21: #{tpu_custom_call.1} parent=1 // pred_fallthru
      _
    %v32 = vld [vmem:[%s0] sm:$0xff]
    %v33 = vld [vmem:[%s0 + $0x8] sm:$0xff]
    %v34 = vxor.u32 %v32, 2147483648
    %v35 = vxor.u32 %v33, 2147483648
    %v36 = vmul.f32 %v34, 1.442695
    %v37 = vpow.pop %v36
    %v38 = vmul.f32 %v35, 1.442695
    %v39 = vpow.pop %v38
    %v40 = vadd.f32 %v37, 1.0
    %v41 = vadd.f32 %v39, 1.0
    %v42 = vrcp.pop %v40
    %v43 = vmul.f32 1.0, %v42
    %v44 = vrcp.pop %v41
    %v45 = vmul.f32 1.0, %v44
    %v46 = vsub.f32 1.0, %v43
    %v47 = vsub.f32 1.0, %v45
    %v48 = vmul.f32 %v46, %v46
    %v49 = vmul.f32 %v47, %v47
    %v50 = vmul.f32 %v48, 0.25
    %v51 = vmul.f32 %v49, 0.25
    %v52 = vadd.f32 %v43, 1e-08
    %v53 = vadd.f32 %v45, 1e-08
    %v54 = vlog2.pop %v52
    %v55 = vmul.f32 %v54, 0.6931472
    %v56 = vlog2.pop %v53
    %v57 = vmul.f32 %v56, 0.6931472
    %v58 = vsub.f32 0.0, %v55
    %v59 = vsub.f32 0.0, %v57
    %v60 = vmul.f32 %v50, %v58
    %v61 = vmul.f32 %v51, %v59
    %v62 = vmul.f32 %v43, %v43
    %v63 = vmul.f32 %v45, %v45
    %v64 = vmul.f32 %v62, 0.75
    %v65 = vmul.f32 %v63, 0.75
    %v66 = vadd.f32 %v46, 1e-08
    %v67 = vadd.f32 %v47, 1e-08
    %v68 = vlog2.pop %v66
    %v69 = vmul.f32 %v68, 0.6931472
    %v70 = vlog2.pop %v67
    %v71 = vmul.f32 %v70, 0.6931472
    %v72 = vsub.f32 0.0, %v69
    %v73 = vsub.f32 0.0, %v71
    %v74 = vmul.f32 %v64, %v72
    %v75 = vmul.f32 %v65, %v73
    %v76 = vsub.f32 %v60, %v74
    %v77 = vsub.f32 %v61, %v75
    %v78 = vld [vmem:[#allocation2] sm:$0xff]
    %v79 = vld [vmem:[#allocation2 + $0x8] sm:$0xff]
    %v80 = vld [vmem:[#allocation2 + $0x10] sm:$0xff]
    %v81 = vld [vmem:[#allocation2 + $0x18] sm:$0xff]
    %v82 = vld [vmem:[#allocation2 + $0x20] sm:$0xff]
    %v83 = vld [vmem:[#allocation2 + $0x28] sm:$0xff]
    %v84 = vld [vmem:[#allocation2 + $0x30] sm:$0xff]
    %v85 = vld [vmem:[#allocation2 + $0x38] sm:$0xff]
    %v86 = vld [vmem:[#allocation2 + $0x40] sm:$0xff]
    %v87 = vld [vmem:[#allocation2 + $0x48] sm:$0xff]
    %v88 = vld [vmem:[#allocation2 + $0x50] sm:$0xff]
    %v89 = vld [vmem:[#allocation2 + $0x58] sm:$0xff]
    %v90 = vld [vmem:[#allocation2 + $0x60] sm:$0xff]
    %v91 = vld [vmem:[#allocation2 + $0x68] sm:$0xff]
    %v92 = vld [vmem:[#allocation2 + $0x70] sm:$0xff]
    %v93 = vld [vmem:[#allocation2 + $0x78] sm:$0xff]
    %94 = vmatprep.subr.mxu0 0.0
    %v95 = vand.u32 %v78, 4294901760
    %96 = vmatpush1.msra.mxu0 %v95
    %97 = vmatprep.subr.mxu0 0.0
    %v98 = vand.u32 %v79, 4294901760
    %99 = vmatpush1.msra.mxu0 %v98
    %100 = vmatprep.subr.mxu0 0.0
    %v101 = vand.u32 %v80, 4294901760
    %102 = vmatpush1.msra.mxu0 %v101
    %103 = vmatprep.subr.mxu0 0.0
    %v104 = vand.u32 %v81, 4294901760
    %105 = vmatpush1.msra.mxu0 %v104
    %106 = vmatprep.subr.mxu0 0.0
    %v107 = vand.u32 %v82, 4294901760
    %108 = vmatpush1.msra.mxu0 %v107
    %109 = vmatprep.subr.mxu0 0.0
    %v110 = vand.u32 %v83, 4294901760
    %111 = vmatpush1.msra.mxu0 %v110
    %112 = vmatprep.subr.mxu0 0.0
    %v113 = vand.u32 %v84, 4294901760
    %114 = vmatpush1.msra.mxu0 %v113
    %115 = vmatprep.subr.mxu0 0.0
    %v116 = vand.u32 %v85, 4294901760
    %117 = vmatpush1.msra.mxu0 %v116
    %118 = vmatprep.subr.mxu0 0.0
    %v119 = vand.u32 %v86, 4294901760
    %120 = vmatpush1.msra.mxu0 %v119
    %121 = vmatprep.subr.mxu0 0.0
    %v122 = vand.u32 %v87, 4294901760
    %123 = vmatpush1.msra.mxu0 %v122
    %124 = vmatprep.subr.mxu0 0.0
    %v125 = vand.u32 %v88, 4294901760
    %126 = vmatpush1.msra.mxu0 %v125
    %127 = vmatprep.subr.mxu0 0.0
    %v128 = vand.u32 %v89, 4294901760
    %129 = vmatpush1.msra.mxu0 %v128
    %130 = vmatprep.subr.mxu0 0.0
    %v131 = vand.u32 %v90, 4294901760
    %132 = vmatpush1.msra.mxu0 %v131
    %133 = vmatprep.subr.mxu0 0.0
    %v134 = vand.u32 %v91, 4294901760
    %135 = vmatpush1.msra.mxu0 %v134
    %136 = vmatprep.subr.mxu0 0.0
    %v137 = vand.u32 %v92, 4294901760
    %138 = vmatpush1.msra.mxu0 %v137
    %139 = vmatprep.subr.mxu0 0.0
    %v140 = vand.u32 %v93, 4294901760
    %141 = vmatpush1.msra.mxu0 %v140
    %142 = vmatprep.subr.mxu0 0.0
    %143 = vmatpush1.msra.mxu0 0.0
    %144 = vmatprep.subr.mxu0 0.0
    %145 = vmatpush1.msra.mxu0 0.0
    %146 = vmatprep.subr.mxu0 0.0
    %147 = vmatpush1.msra.mxu0 0.0
    %148 = vmatprep.subr.mxu0 0.0
    %149 = vmatpush1.msra.mxu0 0.0
    %150 = vmatprep.subr.mxu0 0.0
    %151 = vmatpush1.msra.mxu0 0.0
    %152 = vmatprep.subr.mxu0 0.0
    %153 = vmatpush1.msra.mxu0 0.0
    %154 = vmatprep.subr.mxu0 0.0
    %155 = vmatpush1.msra.mxu0 0.0
    %156 = vmatprep.subr.mxu0 0.0
    %157 = vmatpush1.msra.mxu0 0.0
    %158 = vmatprep.subr.mxu0 0.0
    %159 = vmatpush1.msra.mxu0 0.0
    %160 = vmatprep.subr.mxu0 0.0
    %161 = vmatpush1.msra.mxu0 0.0
    %162 = vmatprep.subr.mxu0 0.0
    %163 = vmatpush1.msra.mxu0 0.0
    %164 = vmatprep.subr.mxu0 0.0
    %165 = vmatpush1.msra.mxu0 0.0
    %166 = vmatprep.subr.mxu0 0.0
    %167 = vmatpush1.msra.mxu0 0.0
    %168 = vmatprep.subr.mxu0 0.0
    %169 = vmatpush1.msra.mxu0 0.0
    %170 = vmatprep.subr.mxu0 0.0
    %171 = vmatpush1.msra.mxu0 0.0
    %172 = vmatprep.subr.mxu0 0.0
    %173 = vmatpush1.msra.mxu0 0.0
    %174 = vmatprep.mubr.f32.mxu0 0.0
    %v175 = vand.u32 %v76, 4294901760
    %v176 = vsub.f32 %v76, %v175
    %v177 = vand.u32 %v176, 4294901760
    %v178 = vsub.f32 %v176, %v177
    %v179 = vand.u32 %v178, 4294901760
    %180 = vmatmul.mubr.f32.gmra.mrb[0].mxu0 %v179
    %v181 = vpop.f32.mrb[0].mxu0
    %v182 = vadd.f32 0.0, %v181
    %v183 = vpop.f32.mrb[0].mxu0
    %184 = vmatprep.mubr.f32.mxu0 0.0
    %v185 = vand.u32 %v77, 4294901760
    %v186 = vsub.f32 %v77, %v185
    %v187 = vand.u32 %v186, 4294901760
    %v188 = vsub.f32 %v186, %v187
    %v189 = vand.u32 %v188, 4294901760
    %190 = vmatmul.mubr.f32.gmra.mrb[0].mxu0 %v189
    %v191 = vpop.f32.mrb[0].mxu0
    %v192 = vadd.f32 0.0, %v191
    %v193 = vpop.f32.mrb[0].mxu0
    %194 = vdwg.mxu0
    %195 = vmatprep.subr.mxu0 0.0
    %v196 = vand.u32 %v78, 4294901760
    %v197 = vsub.f32 %v78, %v196
    %v198 = vand.u32 %v197, 4294901760
    %v199 = vsub.f32 %v197, %v198
    %v200 = vand.u32 %v199, 4294901760
    %201 = vmatpush1.msra.mxu0 %v200
    %202 = vmatprep.subr.mxu0 0.0
    %v203 = vand.u32 %v79, 4294901760
    %v204 = vsub.f32 %v79, %v203
    %v205 = vand.u32 %v204, 4294901760
    %v206 = vsub.f32 %v204, %v205
    %v207 = vand.u32 %v206, 4294901760
    %208 = vmatpush1.msra.mxu0 %v207
    %209 = vmatprep.subr.mxu0 0.0
    %v210 = vand.u32 %v80, 4294901760
    %v211 = vsub.f32 %v80, %v210
    %v212 = vand.u32 %v211, 4294901760
    %v213 = vsub.f32 %v211, %v212
    %v214 = vand.u32 %v213, 4294901760
    %215 = vmatpush1.msra.mxu0 %v214
    %216 = vmatprep.subr.mxu0 0.0
    %v217 = vand.u32 %v81, 4294901760
    %v218 = vsub.f32 %v81, %v217
    %v219 = vand.u32 %v218, 4294901760
    %v220 = vsub.f32 %v218, %v219
    %v221 = vand.u32 %v220, 4294901760
    %222 = vmatpush1.msra.mxu0 %v221
    %223 = vmatprep.subr.mxu0 0.0
    %v224 = vand.u32 %v82, 4294901760
    %v225 = vsub.f32 %v82, %v224
    %v226 = vand.u32 %v225, 4294901760
    %v227 = vsub.f32 %v225, %v226
    %v228 = vand.u32 %v227, 4294901760
    %229 = vmatpush1.msra.mxu0 %v228
    %230 = vmatprep.subr.mxu0 0.0
    %v231 = vand.u32 %v83, 4294901760
    %v232 = vsub.f32 %v83, %v231
    %v233 = vand.u32 %v232, 4294901760
    %v234 = vsub.f32 %v232, %v233
    %v235 = vand.u32 %v234, 4294901760
    %236 = vmatpush1.msra.mxu0 %v235
    %237 = vmatprep.subr.mxu0 0.0
    %v238 = vand.u32 %v84, 4294901760
    %v239 = vsub.f32 %v84, %v238
    %v240 = vand.u32 %v239, 4294901760
    %v241 = vsub.f32 %v239, %v240
    %v242 = vand.u32 %v241, 4294901760
    %243 = vmatpush1.msra.mxu0 %v242
    %244 = vmatprep.subr.mxu0 0.0
    %v245 = vand.u32 %v85, 4294901760
    %v246 = vsub.f32 %v85, %v245
    %v247 = vand.u32 %v246, 4294901760
    %v248 = vsub.f32 %v246, %v247
    %v249 = vand.u32 %v248, 4294901760
    %250 = vmatpush1.msra.mxu0 %v249
    %251 = vmatprep.subr.mxu0 0.0
    %v252 = vand.u32 %v86, 4294901760
    %v253 = vsub.f32 %v86, %v252
    %v254 = vand.u32 %v253, 4294901760
    %v255 = vsub.f32 %v253, %v254
    %v256 = vand.u32 %v255, 4294901760
    %257 = vmatpush1.msra.mxu0 %v256
    %258 = vmatprep.subr.mxu0 0.0
    %v259 = vand.u32 %v87, 4294901760
    %v260 = vsub.f32 %v87, %v259
    %v261 = vand.u32 %v260, 4294901760
    %v262 = vsub.f32 %v260, %v261
    %v263 = vand.u32 %v262, 4294901760
    %264 = vmatpush1.msra.mxu0 %v263
    %265 = vmatprep.subr.mxu0 0.0
    %v266 = vand.u32 %v88, 4294901760
    %v267 = vsub.f32 %v88, %v266
    %v268 = vand.u32 %v267, 4294901760
    %v269 = vsub.f32 %v267, %v268
    %v270 = vand.u32 %v269, 4294901760
    %271 = vmatpush1.msra.mxu0 %v270
    %272 = vmatprep.subr.mxu0 0.0
    %v273 = vand.u32 %v89, 4294901760
    %v274 = vsub.f32 %v89, %v273
    %v275 = vand.u32 %v274, 4294901760
    %v276 = vsub.f32 %v274, %v275
    %v277 = vand.u32 %v276, 4294901760
    %278 = vmatpush1.msra.mxu0 %v277
    %279 = vmatprep.subr.mxu0 0.0
    %v280 = vand.u32 %v90, 4294901760
    %v281 = vsub.f32 %v90, %v280
    %v282 = vand.u32 %v281, 4294901760
    %v283 = vsub.f32 %v281, %v282
    %v284 = vand.u32 %v283, 4294901760
    %285 = vmatpush1.msra.mxu0 %v284
    %286 = vmatprep.subr.mxu0 0.0
    %v287 = vand.u32 %v91, 4294901760
    %v288 = vsub.f32 %v91, %v287
    %v289 = vand.u32 %v288, 4294901760
    %v290 = vsub.f32 %v288, %v289
    %v291 = vand.u32 %v290, 4294901760
    %292 = vmatpush1.msra.mxu0 %v291
    %293 = vmatprep.subr.mxu0 0.0
    %v294 = vand.u32 %v92, 4294901760
    %v295 = vsub.f32 %v92, %v294
    %v296 = vand.u32 %v295, 4294901760
    %v297 = vsub.f32 %v295, %v296
    %v298 = vand.u32 %v297, 4294901760
    %299 = vmatpush1.msra.mxu0 %v298
    %300 = vmatprep.subr.mxu0 0.0
    %v301 = vand.u32 %v93, 4294901760
    %v302 = vsub.f32 %v93, %v301
    %v303 = vand.u32 %v302, 4294901760
    %v304 = vsub.f32 %v302, %v303
    %v305 = vand.u32 %v304, 4294901760
    %306 = vmatpush1.msra.mxu0 %v305
    %307 = vmatprep.subr.mxu0 0.0
    %308 = vmatpush1.msra.mxu0 0.0
    %309 = vmatprep.subr.mxu0 0.0
    %310 = vmatpush1.msra.mxu0 0.0
    %311 = vmatprep.subr.mxu0 0.0
    %312 = vmatpush1.msra.mxu0 0.0
    %313 = vmatprep.subr.mxu0 0.0
    %314 = vmatpush1.msra.mxu0 0.0
    %315 = vmatprep.subr.mxu0 0.0
    %316 = vmatpush1.msra.mxu0 0.0
    %317 = vmatprep.subr.mxu0 0.0
    %318 = vmatpush1.msra.mxu0 0.0
    %319 = vmatprep.subr.mxu0 0.0
    %320 = vmatpush1.msra.mxu0 0.0
    %321 = vmatprep.subr.mxu0 0.0
    %322 = vmatpush1.msra.mxu0 0.0
    %323 = vmatprep.subr.mxu0 0.0
    %324 = vmatpush1.msra.mxu0 0.0
    %325 = vmatprep.subr.mxu0 0.0
    %326 = vmatpush1.msra.mxu0 0.0
    %327 = vmatprep.subr.mxu0 0.0
    %328 = vmatpush1.msra.mxu0 0.0
    %329 = vmatprep.subr.mxu0 0.0
    %330 = vmatpush1.msra.mxu0 0.0
    %331 = vmatprep.subr.mxu0 0.0
    %332 = vmatpush1.msra.mxu0 0.0
    %333 = vmatprep.subr.mxu0 0.0
    %334 = vmatpush1.msra.mxu0 0.0
    %335 = vmatprep.subr.mxu0 0.0
    %336 = vmatpush1.msra.mxu0 0.0
    %337 = vmatprep.subr.mxu0 0.0
    %338 = vmatpush1.msra.mxu0 0.0
    %339 = vmatprep.mubr.f32.mxu0 0.0
    %v340 = vand.u32 %v76, 4294901760
    %341 = vmatmul.mubr.f32.gmra.mrb[0].mxu0 %v340
    %v342 = vpop.f32.mrb[0].mxu0
    %v343 = vadd.f32 %v182, %v342
    %v344 = vpop.f32.mrb[0].mxu0
    %345 = vmatprep.mubr.f32.mxu0 0.0
    %v346 = vand.u32 %v77, 4294901760
    %347 = vmatmul.mubr.f32.gmra.mrb[0].mxu0 %v346
    %v348 = vpop.f32.mrb[0].mxu0
    %v349 = vadd.f32 %v192, %v348
    %v350 = vpop.f32.mrb[0].mxu0
    %351 = vdwg.mxu0
    %352 = vmatprep.subr.mxu0 0.0
    %v353 = vand.u32 %v78, 4294901760
    %v354 = vsub.f32 %v78, %v353
    %355 = vmatpush1.msra.mxu0 %v354
    %356 = vmatprep.subr.mxu0 0.0
    %v357 = vand.u32 %v79, 4294901760
    %v358 = vsub.f32 %v79, %v357
    %359 = vmatpush1.msra.mxu0 %v358
    %360 = vmatprep.subr.mxu0 0.0
    %v361 = vand.u32 %v80, 4294901760
    %v362 = vsub.f32 %v80, %v361
    %363 = vmatpush1.msra.mxu0 %v362
    %364 = vmatprep.subr.mxu0 0.0
    %v365 = vand.u32 %v81, 4294901760
    %v366 = vsub.f32 %v81, %v365
    %367 = vmatpush1.msra.mxu0 %v366
    %368 = vmatprep.subr.mxu0 0.0
    %v369 = vand.u32 %v82, 4294901760
    %v370 = vsub.f32 %v82, %v369
    %371 = vmatpush1.msra.mxu0 %v370
    %372 = vmatprep.subr.mxu0 0.0
    %v373 = vand.u32 %v83, 4294901760
    %v374 = vsub.f32 %v83, %v373
    %375 = vmatpush1.msra.mxu0 %v374
    %376 = vmatprep.subr.mxu0 0.0
    %v377 = vand.u32 %v84, 4294901760
    %v378 = vsub.f32 %v84, %v377
    %379 = vmatpush1.msra.mxu0 %v378
    %380 = vmatprep.subr.mxu0 0.0
    %v381 = vand.u32 %v85, 4294901760
    %v382 = vsub.f32 %v85, %v381
    %383 = vmatpush1.msra.mxu0 %v382
    %384 = vmatprep.subr.mxu0 0.0
    %v385 = vand.u32 %v86, 4294901760
    %v386 = vsub.f32 %v86, %v385
    %387 = vmatpush1.msra.mxu0 %v386
    %388 = vmatprep.subr.mxu0 0.0
    %v389 = vand.u32 %v87, 4294901760
    %v390 = vsub.f32 %v87, %v389
    %391 = vmatpush1.msra.mxu0 %v390
    %392 = vmatprep.subr.mxu0 0.0
    %v393 = vand.u32 %v88, 4294901760
    %v394 = vsub.f32 %v88, %v393
    %395 = vmatpush1.msra.mxu0 %v394
    %396 = vmatprep.subr.mxu0 0.0
    %v397 = vand.u32 %v89, 4294901760
    %v398 = vsub.f32 %v89, %v397
    %399 = vmatpush1.msra.mxu0 %v398
    %400 = vmatprep.subr.mxu0 0.0
    %v401 = vand.u32 %v90, 4294901760
    %v402 = vsub.f32 %v90, %v401
    %403 = vmatpush1.msra.mxu0 %v402
    %404 = vmatprep.subr.mxu0 0.0
    %v405 = vand.u32 %v91, 4294901760
    %v406 = vsub.f32 %v91, %v405
    %407 = vmatpush1.msra.mxu0 %v406
    %408 = vmatprep.subr.mxu0 0.0
    %v409 = vand.u32 %v92, 4294901760
    %v410 = vsub.f32 %v92, %v409
    %411 = vmatpush1.msra.mxu0 %v410
    %412 = vmatprep.subr.mxu0 0.0
    %v413 = vand.u32 %v93, 4294901760
    %v414 = vsub.f32 %v93, %v413
    %415 = vmatpush1.msra.mxu0 %v414
    %416 = vmatprep.subr.mxu0 0.0
    %417 = vmatpush1.msra.mxu0 0.0
    %418 = vmatprep.subr.mxu0 0.0
    %419 = vmatpush1.msra.mxu0 0.0
    %420 = vmatprep.subr.mxu0 0.0
    %421 = vmatpush1.msra.mxu0 0.0
    %422 = vmatprep.subr.mxu0 0.0
    %423 = vmatpush1.msra.mxu0 0.0
    %424 = vmatprep.subr.mxu0 0.0
    %425 = vmatpush1.msra.mxu0 0.0
    %426 = vmatprep.subr.mxu0 0.0
    %427 = vmatpush1.msra.mxu0 0.0
    %428 = vmatprep.subr.mxu0 0.0
    %429 = vmatpush1.msra.mxu0 0.0
    %430 = vmatprep.subr.mxu0 0.0
    %431 = vmatpush1.msra.mxu0 0.0
    %432 = vmatprep.subr.mxu0 0.0
    %433 = vmatpush1.msra.mxu0 0.0
    %434 = vmatprep.subr.mxu0 0.0
    %435 = vmatpush1.msra.mxu0 0.0
    %436 = vmatprep.subr.mxu0 0.0
    %437 = vmatpush1.msra.mxu0 0.0
    %438 = vmatprep.subr.mxu0 0.0
    %439 = vmatpush1.msra.mxu0 0.0
    %440 = vmatprep.subr.mxu0 0.0
    %441 = vmatpush1.msra.mxu0 0.0
    %442 = vmatprep.subr.mxu0 0.0
    %443 = vmatpush1.msra.mxu0 0.0
    %444 = vmatprep.subr.mxu0 0.0
    %445 = vmatpush1.msra.mxu0 0.0
    %446 = vmatprep.subr.mxu0 0.0
    %447 = vmatpush1.msra.mxu0 0.0
    %448 = vmatprep.mubr.f32.mxu0 0.0
    %v449 = vand.u32 %v76, 4294901760
    %v450 = vsub.f32 %v76, %v449
    %451 = vmatmul.mubr.f32.gmra.mrb[0].mxu0 %v450
    %v452 = vpop.f32.mrb[0].mxu0
    %v453 = vadd.f32 %v343, %v452
    %v454 = vpop.f32.mrb[0].mxu0
    %455 = vmatprep.mubr.f32.mxu0 0.0
    %v456 = vand.u32 %v77, 4294901760
    %v457 = vsub.f32 %v77, %v456
    %458 = vmatmul.mubr.f32.gmra.mrb[0].mxu0 %v457
    %v459 = vpop.f32.mrb[0].mxu0
    %v460 = vadd.f32 %v349, %v459
    %v461 = vpop.f32.mrb[0].mxu0
    %462 = vdwg.mxu0
    %463 = vmatprep.subr.mxu0 0.0
    %v464 = vand.u32 %v78, 4294901760
    %465 = vmatpush1.msra.mxu0 %v464
    %466 = vmatprep.subr.mxu0 0.0
    %v467 = vand.u32 %v79, 4294901760
    %468 = vmatpush1.msra.mxu0 %v467
    %469 = vmatprep.subr.mxu0 0.0
    %v470 = vand.u32 %v80, 4294901760
    %471 = vmatpush1.msra.mxu0 %v470
    %472 = vmatprep.subr.mxu0 0.0
    %v473 = vand.u32 %v81, 4294901760
    %474 = vmatpush1.msra.mxu0 %v473
    %475 = vmatprep.subr.mxu0 0.0
    %v476 = vand.u32 %v82, 4294901760
    %477 = vmatpush1.msra.mxu0 %v476
    %478 = vmatprep.subr.mxu0 0.0
    %v479 = vand.u32 %v83, 4294901760
    %480 = vmatpush1.msra.mxu0 %v479
    %481 = vmatprep.subr.mxu0 0.0
    %v482 = vand.u32 %v84, 4294901760
    %483 = vmatpush1.msra.mxu0 %v482
    %484 = vmatprep.subr.mxu0 0.0
    %v485 = vand.u32 %v85, 4294901760
    %486 = vmatpush1.msra.mxu0 %v485
    %487 = vmatprep.subr.mxu0 0.0
    %v488 = vand.u32 %v86, 4294901760
    %489 = vmatpush1.msra.mxu0 %v488
    %490 = vmatprep.subr.mxu0 0.0
    %v491 = vand.u32 %v87, 4294901760
    %492 = vmatpush1.msra.mxu0 %v491
    %493 = vmatprep.subr.mxu0 0.0
    %v494 = vand.u32 %v88, 4294901760
    %495 = vmatpush1.msra.mxu0 %v494
    %496 = vmatprep.subr.mxu0 0.0
    %v497 = vand.u32 %v89, 4294901760
    %498 = vmatpush1.msra.mxu0 %v497
    %499 = vmatprep.subr.mxu0 0.0
    %v500 = vand.u32 %v90, 4294901760
    %501 = vmatpush1.msra.mxu0 %v500
    %502 = vmatprep.subr.mxu0 0.0
    %v503 = vand.u32 %v91, 4294901760
    %504 = vmatpush1.msra.mxu0 %v503
    %505 = vmatprep.subr.mxu0 0.0
    %v506 = vand.u32 %v92, 4294901760
    %507 = vmatpush1.msra.mxu0 %v506
    %508 = vmatprep.subr.mxu0 0.0
    %v509 = vand.u32 %v93, 4294901760
    %510 = vmatpush1.msra.mxu0 %v509
    %511 = vmatprep.subr.mxu0 0.0
    %512 = vmatpush1.msra.mxu0 0.0
    %513 = vmatprep.subr.mxu0 0.0
    %514 = vmatpush1.msra.mxu0 0.0
    %515 = vmatprep.subr.mxu0 0.0
    %516 = vmatpush1.msra.mxu0 0.0
    %517 = vmatprep.subr.mxu0 0.0
    %518 = vmatpush1.msra.mxu0 0.0
    %519 = vmatprep.subr.mxu0 0.0
    %520 = vmatpush1.msra.mxu0 0.0
    %521 = vmatprep.subr.mxu0 0.0
    %522 = vmatpush1.msra.mxu0 0.0
    %523 = vmatprep.subr.mxu0 0.0
    %524 = vmatpush1.msra.mxu0 0.0
    %525 = vmatprep.subr.mxu0 0.0
    %526 = vmatpush1.msra.mxu0 0.0
    %527 = vmatprep.subr.mxu0 0.0
    %528 = vmatpush1.msra.mxu0 0.0
    %529 = vmatprep.subr.mxu0 0.0
    %530 = vmatpush1.msra.mxu0 0.0
    %531 = vmatprep.subr.mxu0 0.0
    %532 = vmatpush1.msra.mxu0 0.0
    %533 = vmatprep.subr.mxu0 0.0
    %534 = vmatpush1.msra.mxu0 0.0
    %535 = vmatprep.subr.mxu0 0.0
    %536 = vmatpush1.msra.mxu0 0.0
    %537 = vmatprep.subr.mxu0 0.0
    %538 = vmatpush1.msra.mxu0 0.0
    %539 = vmatprep.subr.mxu0 0.0
    %540 = vmatpush1.msra.mxu0 0.0
    %541 = vmatprep.subr.mxu0 0.0
    %542 = vmatpush1.msra.mxu0 0.0
    %543 = vmatprep.mubr.f32.mxu0 0.0
    %v544 = vand.u32 %v76, 4294901760
    %v545 = vsub.f32 %v76, %v544
    %v546 = vand.u32 %v545, 4294901760
    %547 = vmatmul.mubr.f32.gmra.mrb[0].mxu0 %v546
    %v548 = vpop.f32.mrb[0].mxu0
    %v549 = vadd.f32 %v453, %v548
    %v550 = vpop.f32.mrb[0].mxu0
    %551 = vmatprep.mubr.f32.mxu0 0.0
    %v552 = vand.u32 %v77, 4294901760
    %v553 = vsub.f32 %v77, %v552
    %v554 = vand.u32 %v553, 4294901760
    %555 = vmatmul.mubr.f32.gmra.mrb[0].mxu0 %v554
    %v556 = vpop.f32.mrb[0].mxu0
    %v557 = vadd.f32 %v460, %v556
    %v558 = vpop.f32.mrb[0].mxu0
    %559 = vdwg.mxu0
    %560 = vmatprep.subr.mxu0 0.0
    %v561 = vand.u32 %v78, 4294901760
    %v562 = vsub.f32 %v78, %v561
    %v563 = vand.u32 %v562, 4294901760
    %564 = vmatpush1.msra.mxu0 %v563
    %565 = vmatprep.subr.mxu0 0.0
    %v566 = vand.u32 %v79, 4294901760
    %v567 = vsub.f32 %v79, %v566
    %v568 = vand.u32 %v567, 4294901760
    %569 = vmatpush1.msra.mxu0 %v568
    %570 = vmatprep.subr.mxu0 0.0
    %v571 = vand.u32 %v80, 4294901760
    %v572 = vsub.f32 %v80, %v571
    %v573 = vand.u32 %v572, 4294901760
    %574 = vmatpush1.msra.mxu0 %v573
    %575 = vmatprep.subr.mxu0 0.0
    %v576 = vand.u32 %v81, 4294901760
    %v577 = vsub.f32 %v81, %v576
    %v578 = vand.u32 %v577, 4294901760
    %579 = vmatpush1.msra.mxu0 %v578
    %580 = vmatprep.subr.mxu0 0.0
    %v581 = vand.u32 %v82, 4294901760
    %v582 = vsub.f32 %v82, %v581
    %v583 = vand.u32 %v582, 4294901760
    %584 = vmatpush1.msra.mxu0 %v583
    %585 = vmatprep.subr.mxu0 0.0
    %v586 = vand.u32 %v83, 4294901760
    %v587 = vsub.f32 %v83, %v586
    %v588 = vand.u32 %v587, 4294901760
    %589 = vmatpush1.msra.mxu0 %v588
    %590 = vmatprep.subr.mxu0 0.0
    %v591 = vand.u32 %v84, 4294901760
    %v592 = vsub.f32 %v84, %v591
    %v593 = vand.u32 %v592, 4294901760
    %594 = vmatpush1.msra.mxu0 %v593
    %595 = vmatprep.subr.mxu0 0.0
    %v596 = vand.u32 %v85, 4294901760
    %v597 = vsub.f32 %v85, %v596
    %v598 = vand.u32 %v597, 4294901760
    %599 = vmatpush1.msra.mxu0 %v598
    %600 = vmatprep.subr.mxu0 0.0
    %v601 = vand.u32 %v86, 4294901760
    %v602 = vsub.f32 %v86, %v601
    %v603 = vand.u32 %v602, 4294901760
    %604 = vmatpush1.msra.mxu0 %v603
    %605 = vmatprep.subr.mxu0 0.0
    %v606 = vand.u32 %v87, 4294901760
    %v607 = vsub.f32 %v87, %v606
    %v608 = vand.u32 %v607, 4294901760
    %609 = vmatpush1.msra.mxu0 %v608
    %610 = vmatprep.subr.mxu0 0.0
    %v611 = vand.u32 %v88, 4294901760
    %v612 = vsub.f32 %v88, %v611
    %v613 = vand.u32 %v612, 4294901760
    %614 = vmatpush1.msra.mxu0 %v613
    %615 = vmatprep.subr.mxu0 0.0
    %v616 = vand.u32 %v89, 4294901760
    %v617 = vsub.f32 %v89, %v616
    %v618 = vand.u32 %v617, 4294901760
    %619 = vmatpush1.msra.mxu0 %v618
    %620 = vmatprep.subr.mxu0 0.0
    %v621 = vand.u32 %v90, 4294901760
    %v622 = vsub.f32 %v90, %v621
    %v623 = vand.u32 %v622, 4294901760
    %624 = vmatpush1.msra.mxu0 %v623
    %625 = vmatprep.subr.mxu0 0.0
    %v626 = vand.u32 %v91, 4294901760
    %v627 = vsub.f32 %v91, %v626
    %v628 = vand.u32 %v627, 4294901760
    %629 = vmatpush1.msra.mxu0 %v628
    %630 = vmatprep.subr.mxu0 0.0
    %v631 = vand.u32 %v92, 4294901760
    %v632 = vsub.f32 %v92, %v631
    %v633 = vand.u32 %v632, 4294901760
    %634 = vmatpush1.msra.mxu0 %v633
    %635 = vmatprep.subr.mxu0 0.0
    %v636 = vand.u32 %v93, 4294901760
    %v637 = vsub.f32 %v93, %v636
    %v638 = vand.u32 %v637, 4294901760
    %639 = vmatpush1.msra.mxu0 %v638
    %640 = vmatprep.subr.mxu0 0.0
    %641 = vmatpush1.msra.mxu0 0.0
    %642 = vmatprep.subr.mxu0 0.0
    %643 = vmatpush1.msra.mxu0 0.0
    %644 = vmatprep.subr.mxu0 0.0
    %645 = vmatpush1.msra.mxu0 0.0
    %646 = vmatprep.subr.mxu0 0.0
    %647 = vmatpush1.msra.mxu0 0.0
    %648 = vmatprep.subr.mxu0 0.0
    %649 = vmatpush1.msra.mxu0 0.0
    %650 = vmatprep.subr.mxu0 0.0
    %651 = vmatpush1.msra.mxu0 0.0
    %652 = vmatprep.subr.mxu0 0.0
    %653 = vmatpush1.msra.mxu0 0.0
    %654 = vmatprep.subr.mxu0 0.0
    %655 = vmatpush1.msra.mxu0 0.0
    %656 = vmatprep.subr.mxu0 0.0
    %657 = vmatpush1.msra.mxu0 0.0
    %658 = vmatprep.subr.mxu0 0.0
    %659 = vmatpush1.msra.mxu0 0.0
    %660 = vmatprep.subr.mxu0 0.0
    %661 = vmatpush1.msra.mxu0 0.0
    %662 = vmatprep.subr.mxu0 0.0
    %663 = vmatpush1.msra.mxu0 0.0
    %664 = vmatprep.subr.mxu0 0.0
    %665 = vmatpush1.msra.mxu0 0.0
    %666 = vmatprep.subr.mxu0 0.0
    %667 = vmatpush1.msra.mxu0 0.0
    %668 = vmatprep.subr.mxu0 0.0
    %669 = vmatpush1.msra.mxu0 0.0
    %670 = vmatprep.subr.mxu0 0.0
    %671 = vmatpush1.msra.mxu0 0.0
    %672 = vmatprep.mubr.f32.mxu0 0.0
    %v673 = vand.u32 %v76, 4294901760
    %674 = vmatmul.mubr.f32.gmra.mrb[0].mxu0 %v673
    %v675 = vpop.f32.mrb[0].mxu0
    %v676 = vadd.f32 %v549, %v675
    %v677 = vpop.f32.mrb[0].mxu0
    %678 = vmatprep.mubr.f32.mxu0 0.0
    %v679 = vand.u32 %v77, 4294901760
    %680 = vmatmul.mubr.f32.gmra.mrb[0].mxu0 %v679
    %v681 = vpop.f32.mrb[0].mxu0
    %v682 = vadd.f32 %v557, %v681
    %v683 = vpop.f32.mrb[0].mxu0
    %684 = vdwg.mxu0
    %685 = vmatprep.subr.mxu0 0.0
    %v686 = vand.u32 %v78, 4294901760
    %687 = vmatpush1.msra.mxu0 %v686
    %688 = vmatprep.subr.mxu0 0.0
    %v689 = vand.u32 %v79, 4294901760
    %690 = vmatpush1.msra.mxu0 %v689
    %691 = vmatprep.subr.mxu0 0.0
    %v692 = vand.u32 %v80, 4294901760
    %693 = vmatpush1.msra.mxu0 %v692
    %694 = vmatprep.subr.mxu0 0.0
    %v695 = vand.u32 %v81, 4294901760
    %696 = vmatpush1.msra.mxu0 %v695
    %697 = vmatprep.subr.mxu0 0.0
    %v698 = vand.u32 %v82, 4294901760
    %699 = vmatpush1.msra.mxu0 %v698
    %700 = vmatprep.subr.mxu0 0.0
    %v701 = vand.u32 %v83, 4294901760
    %702 = vmatpush1.msra.mxu0 %v701
    %703 = vmatprep.subr.mxu0 0.0
    %v704 = vand.u32 %v84, 4294901760
    %705 = vmatpush1.msra.mxu0 %v704
    %706 = vmatprep.subr.mxu0 0.0
    %v707 = vand.u32 %v85, 4294901760
    %708 = vmatpush1.msra.mxu0 %v707
    %709 = vmatprep.subr.mxu0 0.0
    %v710 = vand.u32 %v86, 4294901760
    %711 = vmatpush1.msra.mxu0 %v710
    %712 = vmatprep.subr.mxu0 0.0
    %v713 = vand.u32 %v87, 4294901760
    %714 = vmatpush1.msra.mxu0 %v713
    %715 = vmatprep.subr.mxu0 0.0
    %v716 = vand.u32 %v88, 4294901760
    %717 = vmatpush1.msra.mxu0 %v716
    %718 = vmatprep.subr.mxu0 0.0
    %v719 = vand.u32 %v89, 4294901760
    %720 = vmatpush1.msra.mxu0 %v719
    %721 = vmatprep.subr.mxu0 0.0
    %v722 = vand.u32 %v90, 4294901760
    %723 = vmatpush1.msra.mxu0 %v722
    %724 = vmatprep.subr.mxu0 0.0
    %v725 = vand.u32 %v91, 4294901760
    %726 = vmatpush1.msra.mxu0 %v725
    %727 = vmatprep.subr.mxu0 0.0
    %v728 = vand.u32 %v92, 4294901760
    %729 = vmatpush1.msra.mxu0 %v728
    %730 = vmatprep.subr.mxu0 0.0
    %v731 = vand.u32 %v93, 4294901760
    %732 = vmatpush1.msra.mxu0 %v731
    %733 = vmatprep.subr.mxu0 0.0
    %734 = vmatpush1.msra.mxu0 0.0
    %735 = vmatprep.subr.mxu0 0.0
    %736 = vmatpush1.msra.mxu0 0.0
    %737 = vmatprep.subr.mxu0 0.0
    %738 = vmatpush1.msra.mxu0 0.0
    %739 = vmatprep.subr.mxu0 0.0
    %740 = vmatpush1.msra.mxu0 0.0
    %741 = vmatprep.subr.mxu0 0.0
    %742 = vmatpush1.msra.mxu0 0.0
    %743 = vmatprep.subr.mxu0 0.0
    %744 = vmatpush1.msra.mxu0 0.0
    %745 = vmatprep.subr.mxu0 0.0
    %746 = vmatpush1.msra.mxu0 0.0
    %747 = vmatprep.subr.mxu0 0.0
    %748 = vmatpush1.msra.mxu0 0.0
    %749 = vmatprep.subr.mxu0 0.0
    %750 = vmatpush1.msra.mxu0 0.0
    %751 = vmatprep.subr.mxu0 0.0
    %752 = vmatpush1.msra.mxu0 0.0
    %753 = vmatprep.subr.mxu0 0.0
    %754 = vmatpush1.msra.mxu0 0.0
    %755 = vmatprep.subr.mxu0 0.0
    %756 = vmatpush1.msra.mxu0 0.0
    %757 = vmatprep.subr.mxu0 0.0
    %758 = vmatpush1.msra.mxu0 0.0
    %759 = vmatprep.subr.mxu0 0.0
    %760 = vmatpush1.msra.mxu0 0.0
    %761 = vmatprep.subr.mxu0 0.0
    %762 = vmatpush1.msra.mxu0 0.0
    %763 = vmatprep.subr.mxu0 0.0
    %764 = vmatpush1.msra.mxu0 0.0
    %765 = vmatprep.mubr.f32.mxu0 0.0
    %v766 = vand.u32 %v76, 4294901760
    %767 = vmatmul.mubr.f32.gmra.mrb[0].mxu0 %v766
    %v768 = vpop.f32.mrb[0].mxu0
    %v769 = vadd.f32 %v676, %v768
    %v770 = vpop.f32.mrb[0].mxu0
    %771 = vmatprep.mubr.f32.mxu0 0.0
    %v772 = vand.u32 %v77, 4294901760
    %773 = vmatmul.mubr.f32.gmra.mrb[0].mxu0 %v772
    %v774 = vpop.f32.mrb[0].mxu0
    %v775 = vadd.f32 %v682, %v774
    %v776 = vpop.f32.mrb[0].mxu0
    %777 = vdwg.mxu0
    %v778 = vld [vmem:[%s1] sm:$0xff]
    %v779 = vld [vmem:[%s1 + $0x8] sm:$0xff]
    %v780 = vld [vmem:[%s2] sm:$0xff]
    %782 = vset.pattern.permute.xlu0 0
    %783 = vperm.xlu0 %782, %v778
    %v784 = vpop.permute.xlu0 %783
    %787 = vset.pattern.permute.xlu0 0
    %788 = vperm.xlu0 %787, %v779
    %v789 = vpop.permute.xlu0 %788
    %v791 = vlaneseq
    %v792 = vshrl.u32 %v791, 7
    %v793 = vsub.s32 0, %v792
    %v794 = vrot.slane %v780, %v793
    %v795 = vsub.f32 %v784, %v794
    %v796 = vsub.f32 %v789, %v794
    %v797 = vand.u32 2147483647, %v795
    %v798 = vand.u32 2147483647, %v796
    %799 = vset.pattern.permute.xlu0 1
    %800 = vperm.xlu0 %799, %v778
    %v801 = vpop.permute.xlu0 %800
    %803 = vset.pattern.permute.xlu0 1
    %804 = vperm.xlu0 %803, %v779
    %v805 = vpop.permute.xlu0 %804
    %v807 = vlaneseq
    %v808 = vshrl.u32 %v807, 7
    %v809 = vsub.s32 1, %v808
    %v810 = vrot.slane %v780, %v809
    %v811 = vsub.f32 %v801, %v810
    %v812 = vsub.f32 %v805, %v810
    %v813 = vand.u32 2147483647, %v811
    %v814 = vand.u32 2147483647, %v812
    %v815 = vadd.f32 %v797, %v813
    %v816 = vadd.f32 %v798, %v814
    %817 = vset.pattern.permute.xlu0 2
    %818 = vperm.xlu0 %817, %v778
    %v819 = vpop.permute.xlu0 %818
    %821 = vset.pattern.permute.xlu0 2
    %822 = vperm.xlu0 %821, %v779
    %v823 = vpop.permute.xlu0 %822
    %v825 = vlaneseq
    %v826 = vshrl.u32 %v825, 7
    %v827 = vsub.s32 2, %v826
    %v828 = vrot.slane %v780, %v827
    %v829 = vsub.f32 %v819, %v828
    %v830 = vsub.f32 %v823, %v828
    %v831 = vand.u32 2147483647, %v829
    %v832 = vand.u32 2147483647, %v830
    %v833 = vadd.f32 %v815, %v831
    %v834 = vadd.f32 %v816, %v832
    %835 = vset.pattern.permute.xlu0 3
    %836 = vperm.xlu0 %835, %v778
    %v837 = vpop.permute.xlu0 %836
    %839 = vset.pattern.permute.xlu0 3
    %840 = vperm.xlu0 %839, %v779
    %v841 = vpop.permute.xlu0 %840
    %v843 = vlaneseq
    %v844 = vshrl.u32 %v843, 7
    %v845 = vsub.s32 3, %v844
    %v846 = vrot.slane %v780, %v845
    %v847 = vsub.f32 %v837, %v846
    %v848 = vsub.f32 %v841, %v846
    %v849 = vand.u32 2147483647, %v847
    %v850 = vand.u32 2147483647, %v848
    %v851 = vadd.f32 %v833, %v849
    %v852 = vadd.f32 %v834, %v850
    %v853 = vmul.f32 %v778, 0.5
    %v854 = vmul.f32 %v779, 0.5
    %857 = vrot.lane.b32.xlu0 %v853, 126
    %v858 = vpop.permute.xlu0 %857
    %859 = vrot.lane.b32.xlu0 %v854, 126
    %v860 = vpop.permute.xlu0 %859
    %v863 = vsub.f32 %v778, %v858
    %v864 = vsub.f32 %v779, %v860
    %v865 = vadd.f32 %v778, %v858
    %v866 = vadd.f32 %v779, %v860
    %v867 = vsub.f32 %v865, %v863
    %v868 = vsub.f32 %v866, %v864
    %871 = vrot.lane.b32.xlu0 %v867, 127
    %v872 = vpop.permute.xlu0 %871
    %873 = vrot.lane.b32.xlu0 %v868, 127
    %v874 = vpop.permute.xlu0 %873
    %v877 = vmul.f32 %v867, %v872
    %v878 = vmul.f32 %v868, %v874
    %v880 = vrot.slane %v780, 6
    %v882 = vsub.f32 %v780, %v880
    %v884 = vrot.slane %v882, 1
    %v886 = vmul.f32 %v882, %v884
    %888 = vset.pattern.permute.xlu0 0
    %889 = vperm.xlu0 %888, %v865
    %v890 = vpop.permute.xlu0 %889
    %893 = vset.pattern.permute.xlu0 0
    %894 = vperm.xlu0 %893, %v866
    %v895 = vpop.permute.xlu0 %894
    %v897 = vlaneseq
    %v898 = vshrl.u32 %v897, 7
    %v899 = vsub.s32 6, %v898
    %v900 = vrot.slane %v780, %v899
    %v901 = vmin.f32 %v890, %v900
    %v902 = vmin.f32 %v895, %v900
    %904 = vset.pattern.permute.xlu0 0
    %905 = vperm.xlu0 %904, %v863
    %v906 = vpop.permute.xlu0 %905
    %909 = vset.pattern.permute.xlu0 0
    %910 = vperm.xlu0 %909, %v864
    %v911 = vpop.permute.xlu0 %910
    %v913 = vlaneseq
    %v914 = vshrl.u32 %v913, 7
    %v915 = vsub.s32 4, %v914
    %v916 = vrot.slane %v780, %v915
    %v917 = vmax.f32 %v906, %v916
    %v918 = vmax.f32 %v911, %v916
    %v919 = vsub.f32 %v901, %v917
    %v920 = vsub.f32 %v902, %v918
    %v921 = vmax.f32 %v919, 0.0
    %v922 = vmax.f32 %v920, 0.0
    %923 = vset.pattern.permute.xlu0 1
    %924 = vperm.xlu0 %923, %v865
    %v925 = vpop.permute.xlu0 %924
    %927 = vset.pattern.permute.xlu0 1
    %928 = vperm.xlu0 %927, %v866
    %v929 = vpop.permute.xlu0 %928
    %v931 = vlaneseq
    %v932 = vshrl.u32 %v931, 7
    %v933 = vsub.s32 7, %v932
    %v934 = vrot.slane %v780, %v933
    %v935 = vmin.f32 %v925, %v934
    %v936 = vmin.f32 %v929, %v934
    %937 = vset.pattern.permute.xlu0 1
    %938 = vperm.xlu0 %937, %v863
    %v939 = vpop.permute.xlu0 %938
    %941 = vset.pattern.permute.xlu0 1
    %942 = vperm.xlu0 %941, %v864
    %v943 = vpop.permute.xlu0 %942
    %v945 = vlaneseq
    %v946 = vshrl.u32 %v945, 7
    %v947 = vsub.s32 5, %v946
    %v948 = vrot.slane %v780, %v947
    %v949 = vmax.f32 %v939, %v948
    %v950 = vmax.f32 %v943, %v948
    %v951 = vsub.f32 %v935, %v949
    %v952 = vsub.f32 %v936, %v950
    %v953 = vmax.f32 %v951, 0.0
    %v954 = vmax.f32 %v952, 0.0
    %v955 = vmul.f32 %v921, %v953
    %v956 = vmul.f32 %v922, %v954
    %958 = vset.pattern.permute.xlu0 0
    %959 = vperm.xlu0 %958, %v877
    %v960 = vpop.permute.xlu0 %959
    %963 = vset.pattern.permute.xlu0 0
    %964 = vperm.xlu0 %963, %v878
    %v965 = vpop.permute.xlu0 %964
    %v967 = vlaneseq
    %v968 = vshrl.u32 %v967, 7
    %v969 = vsub.s32 6, %v968
    %v970 = vrot.slane %v886, %v969
    %v971 = vadd.f32 %v960, %v970
    %v972 = vadd.f32 %v965, %v970
    %v973 = vsub.f32 %v971, %v955
    %v974 = vsub.f32 %v972, %v956
    %v975 = vrcp.pop %v973
    %v976 = vrcp.pop %v974
    %v977 = vmul.f32 %v955, %v975
    %v978 = vmul.f32 %v956, %v976
    %v979 = vmax.f32 %v890, %v900
    %v980 = vmax.f32 %v895, %v900
    %v981 = vmin.f32 %v906, %v916
    %v982 = vmin.f32 %v911, %v916
    %v983 = vsub.f32 %v979, %v981
    %v984 = vsub.f32 %v980, %v982
    %v985 = vmax.f32 %v983, 0.0
    %v986 = vmax.f32 %v984, 0.0
    %v987 = vmax.f32 %v925, %v934
    %v988 = vmax.f32 %v929, %v934
    %v989 = vmin.f32 %v939, %v948
    %v990 = vmin.f32 %v943, %v948
    %v991 = vsub.f32 %v987, %v989
    %v992 = vsub.f32 %v988, %v990
    %v993 = vmax.f32 %v991, 0.0
    %v994 = vmax.f32 %v992, 0.0
    %v995 = vmul.f32 %v985, %v993
    %v996 = vmul.f32 %v986, %v994
    %v997 = vsub.f32 %v995, %v973
    %v998 = vsub.f32 %v996, %v974
    %v999 = vrcp.pop %v995
    %v1000 = vrcp.pop %v996
    %v1001 = vmul.f32 %v997, %v999
    %v1002 = vmul.f32 %v998, %v1000
    %v1003 = vsub.f32 %v977, %v1001
    %v1004 = vsub.f32 %v978, %v1002
    %v1005 = vadd.f32 %v851, %v769
    %v1006 = vadd.f32 %v852, %v775
    %v1007 = vsub.f32 0.0, %v1003
    %v1008 = vsub.f32 0.0, %v1004
    %v1009 = vadd.f32 %v1005, %v1007
    %v1010 = vadd.f32 %v1006, %v1008
    %1011 = vst [vmem:[#allocation5] sm:$0xff] %v1009
    %1012 = vst [vmem:[#allocation5 + $0x8] sm:$0xff] %v1010
    // Predicated region
    $region22: #{tpu_custom_call.1} parent=1 // pred_check
      _
    $region23: #{tpu_custom_call.1} parent=1 // pred_check_branch
      %1014 = sbr.rel (0) target = $region25
    $region24: #{tpu_custom_call.1} parent=1 // pred_region
      %s1016 = ssub.s32 256, 256
      %1017 = vsyncadd [#allocation4], %s1016
      %s1018 = sshll.u32 [#allocation5], 4
      %s1019 = int_to_ptr.vmem [resolvable:$true] %s1018
      %1024 = dma.vmem_to_hbm [thread:$0]  %s1019, 256, %s4, [#allocation4], 128, 128, 8
    $region25: #{tpu_custom_call.1} parent=1 // pred_fallthru
      _
    // Predicated region
    $region26: #{tpu_custom_call.1} parent=1 // pred_check
      _
    $region27: #{tpu_custom_call.1} parent=1 // pred_check_branch
      %1026 = sbr.rel (0) target = $region29
    $region28: #{tpu_custom_call.1} parent=1 // pred_region
      %1027 = dma.done [#allocation4], 256
    $region29: #{tpu_custom_call.1} parent=1 // pred_fallthru
      _
    %1028 = vsyncpa [#allocation3], 1
    %1029 = vsyncpa [#allocation4], 1

</llo_original>
